<compile_context>
chip_gen: v6e
topology: v6e:2x2x1
jax: 0.10.0
libtpu: 0.0.40
codegen_flags: <defaults>
</compile_context>

<pallas_src>
import functools

import jax
import jax.numpy as jnp
from jax import lax
from jax.experimental import pallas as pl
from jax.experimental.pallas import tpu as pltpu


def _focal_weight(one_minus_pt, gamma):
    """(1 - pt) ** gamma, specialized to multiplies for small integer gamma."""
    g = float(gamma)
    if g == 0.0:
        return jnp.ones_like(one_minus_pt)
    if g.is_integer() and 1 <= int(g) <= 8:
        w = one_minus_pt
        for _ in range(int(g) - 1):
            w = w * one_minus_pt
        return w
    return one_minus_pt ** g


def _focal_loss_kernel(logits_ref, targets_ref, out_ref, cls_ids_ref, *,
                       alpha, gamma, n_total, n_tiles, tiles_per_split, tile_n):
    s = pl.program_id(0)              # core-split axis ("parallel")
    i = pl.program_id(1)              # tile-within-split axis ("arbitrary")
    blk = s * tiles_per_split + i     # global row-tile index

    @pl.when(i == 0)
    def _init():
        out_ref[...] = jnp.zeros_like(out_ref)
        # Hoisted class-id iota: generated once per split, reused by every
        # tile (cuts ~1 VPU op/element/tile once the kernel is VALU-bound).
        cls_ids_ref[...] = lax.broadcasted_iota(jnp.int32, cls_ids_ref.shape, 1)

    # Skip all compute on the duplicated/clamped tail tile (its DMA already
    # happened; only the math is wasted work worth saving).
    @pl.when(blk < n_tiles)
    def _compute():
        # TODO(synk): on bf16-capable VPUs (v6e/v7x) the max/sub path could stay
        # in bf16 and promote to f32 only at exp/sum; kept f32 for portability.
        logits = logits_ref[...].astype(jnp.float32)            # (TN, C)
        tn, c = logits.shape
        tgt = targets_ref[...]                                   # (TN, 1) int32

        # Numerically-stable log-softmax pieces (no gather: the target logit is
        # picked with a masked row-sum on the VPU/XLU, never the MXU).
        m = jnp.max(logits, axis=-1, keepdims=True)              # (TN, 1)
        shifted = logits - m
        sumexp = jnp.sum(jnp.exp(shifted), axis=-1, keepdims=True)

        is_tgt = cls_ids_ref[...] == tgt                         # (TN, C) bool
        tgt_shifted = jnp.sum(jnp.where(is_tgt, shifted, 0.0),
                              axis=-1, keepdims=True)            # (TN, 1)

        ce = jnp.maximum(jnp.log(sumexp) - tgt_shifted, 0.0)     # (TN, 1), >= 0
        # pt = exp(-ce): one per-row EUP exp replaces the previous second
        # (TN, C) masked where + cross-lane sum.
        pt = jnp.exp(-ce)                                        # in (0, 1]
        focal = alpha * _focal_weight(1.0 - pt, gamma) * ce      # (TN, 1)

        # Mask ragged tail rows beyond the true batch size.
        row_ids = lax.broadcasted_iota(jnp.int32, (tn, 1), 0)
        valid = row_ids < (n_total - blk * tile_n)
        out_ref[...] += jnp.sum(jnp.where(valid, focal, 0.0))


def _chip_config():
    """(num_tensorcores, scoped vmem_limit_bytes) for the local TPU."""
    try:
        kind = jax.devices()[0].device_kind.lower()
    except Exception:
        kind = ""
    num_cores = 2 if "v7" in kind else 1          # v7x: 2 TCs/chip share HBM
    try:
        vmem_physical = int(pltpu.get_tpu_info().vmem_capacity_bytes)
    except Exception:
        vmem_physical = 64 * 1024 * 1024          # conservative fallback
    # v7x (64 MiB physical) -> 32 MiB scoped; v5e/v6e (128 MiB) -> 64 MiB.
    vmem_limit = min(vmem_physical // 2, 64 * 1024 * 1024)
    return num_cores, vmem_limit


def _choose_tile_n(n, c, itemsize, vmem_limit_bytes):
    """Largest row-tile such that everything live in VMEM fits the budget."""
    c_pad = max(((c + 127) // 128) * 128, 128)    # lane padding of (TN, C) tiles
    bytes_per_row = (
        2 * c_pad * itemsize    # double-buffered logits input
        + 4 * c_pad * 4         # live f32 (TN, C) temporaries (cast/shift/exp/where)
        + 1 * c_pad * 4         # hoisted class-id iota scratch (int32)
        + 2 * 128 * 4           # double-buffered lane-padded (TN, 1) int32 targets
        + 64                    # per-row f32 columns (m, sumexp, ce, pt, ...)
    )
    budget = int(0.70 * vmem_limit_bytes)         # headroom for compiler scratch
    tn = budget // max(bytes_per_row, 1)
    tn = int(min(tn, 32768))
    tn -= tn % 8
    tn = max(tn, 8)
    if tn >= n:
        return n                # single full-extent block: always layout-legal
    return tn
    # TODO(synk): for vocab-scale C where a single (8, C) f32 row no longer fits
    # VMEM, add an inner C grid axis with an online logsumexp carried in scratch.


def focal_loss(logits, targets, *, alpha=1.0, gamma=2.0, reduction="mean",
               tile_n=None):
    """logits: (N, C) float (f32/bf16); targets: (N,) int. Scalar loss."""
    n, c = logits.shape
    # Targets kept as a dense (N, 1) int32 operand (4 B/row in HBM). Only its
    # VMEM tile is lane-padded; that cost is included in _choose_tile_n. A
    # (1, N) lane-dense block would need an in-kernel int32 lane->sublane
    # transpose that Mosaic does not lower reliably for (1, K) blocks.
    targets_2d = targets.astype(jnp.int32).reshape(n, 1)

    num_cores, vmem_limit = _chip_config()

    if tile_n is None:
        tile_n = _choose_tile_n(n, c, jnp.dtype(logits.dtype).itemsize, vmem_limit)
    tile_n = int(tile_n)

    n_tiles = (n + tile_n - 1) // tile_n
    # 2-way parallel split only on dual-TensorCore chips (v7x); on single-core
    # v5e/v6e it just adds grid-step overhead and a wasted clamped tile.
    num_splits = num_cores if (num_cores > 1 and n_tiles >= 2) else 1
    tiles_per_split = (n_tiles + num_splits - 1) // num_splits

    def row_block(s, i):
        blk = s * tiles_per_split + i
        # Clamp so duplicated grid points past the last real tile stay in
        # bounds; the kernel skips their compute via pl.when(blk < n_tiles).
        return (jnp.minimum(blk, n_tiles - 1), 0)

    kernel = functools.partial(
        _focal_loss_kernel,
        alpha=float(alpha), gamma=float(gamma),
        n_total=n, n_tiles=n_tiles,
        tiles_per_split=tiles_per_split, tile_n=tile_n)

    out = pl.pallas_call(
        kernel,
        # One sublane-padded (8, 1) partial-sum block per core split.
        out_shape=jax.ShapeDtypeStruct((num_splits * 8, 1), jnp.float32),
        grid_spec=pltpu.PrefetchScalarGridSpec(
            num_scalar_prefetch=0,
            grid=(num_splits, tiles_per_split),
            in_specs=[
                pl.BlockSpec((tile_n, c), row_block),
                pl.BlockSpec((tile_n, 1), row_block),
            ],
            out_specs=pl.BlockSpec((8, 1), lambda s, i: (s, 0)),
            scratch_shapes=[pltpu.VMEM((tile_n, c), jnp.int32)],
        ),
        compiler_params=pltpu.CompilerParams(
            dimension_semantics=("parallel", "arbitrary"),
            vmem_limit_bytes=vmem_limit),
    )(logits, targets_2d)

    total = jnp.sum(out[::8, 0])        # one accumulated partial sum per split
    if reduction == "mean":
        return total / jnp.float32(n)
    if reduction == "sum":
        return total
    # TODO(synk): reduction='none' (per-sample (N,) output) needs a per-row
    # out_spec variant; only 'mean' and 'sum' are implemented here.
    raise NotImplementedError("reduction='none' not implemented in the kernel")


def _focal_loss_ref(logits, targets, *, alpha=1.0, gamma=2.0, reduction="mean"):
    logits = logits.astype(jnp.float32)
    lse = jax.scipy.special.logsumexp(logits, axis=-1)
    tgt_logit = jnp.take_along_axis(
        logits, targets[:, None].astype(jnp.int32), axis=-1)[:, 0]
    ce = lse - tgt_logit
    pt = jnp.exp(-ce)
    fl = alpha * (1.0 - pt) ** gamma * ce
    return jnp.mean(fl) if reduction == "mean" else jnp.sum(fl)


if __name__ == "__main__":
    key = jax.random.PRNGKey(0)
    k1, k2, k3, k4 = jax.random.split(key, 4)

    # Case 1: small shapes (single full block), default alpha/gamma, mean + sum.
    N1, C1 = 16, 32
    logits1 = jax.random.normal(k1, (N1, C1), dtype=jnp.float32)
    targets1 = jax.random.randint(k2, (N1,), 0, C1, dtype=jnp.int32)
    loss1 = focal_loss(logits1, targets1, alpha=1.0, gamma=2.0)
    jax.block_until_ready(loss1)
    ref1 = _focal_loss_ref(logits1, targets1, alpha=1.0, gamma=2.0)
    assert jnp.allclose(loss1, ref1, rtol=1e-5, atol=1e-5), (loss1, ref1)

    loss1s = focal_loss(logits1, targets1, alpha=1.0, gamma=2.0, reduction="sum")
    jax.block_until_ready(loss1s)
    ref1s = _focal_loss_ref(logits1, targets1, alpha=1.0, gamma=2.0, reduction="sum")
    assert jnp.allclose(loss1s, ref1s, rtol=1e-5, atol=1e-5), (loss1s, ref1s)

    # Case 2: forces the tiled path (multiple tiles, ragged last tile, and the
    # 2-way core split + clamped-tile skip on v7x) while staying small.
    N2, C2 = 300, 32
    logits2 = jax.random.normal(k3, (N2, C2), dtype=jnp.float32)
    targets2 = jax.random.randint(k4, (N2,), 0, C2, dtype=jnp.int32)
    loss2 = focal_loss(logits2, targets2, alpha=0.25, gamma=2.0, tile_n=128)
    jax.block_until_ready(loss2)
    ref2 = _focal_loss_ref(logits2, targets2, alpha=0.25, gamma=2.0)
    assert jnp.allclose(loss2, ref2, rtol=1e-5, atol=1e-5), (loss2, ref2)

    print("KERNEL_OK")
</pallas_src>

<mosaic_0001>
module attributes {stable_mosaic.version = 11 : i64} {
  func.func @_focal_loss_kernel(%arg0: i32, %arg1: i32, %arg2: memref<16x32xf32, #tpu.memory_space<vmem>>, %arg3: memref<16x1xi32, #tpu.memory_space<vmem>>, %arg4: memref<8x1xf32, #tpu.memory_space<vmem>>, %arg5: memref<16x32xi32, #tpu.memory_space<vmem>>) attributes {dimension_semantics = [#tpu.dimension_semantics<parallel>, #tpu.dimension_semantics<arbitrary>], iteration_bounds = array<i64: 1, 1>, scalar_prefetch = 0 : i64, scratch_operands = 1 : i64, tpu.core_type = #tpu.core_type<tc>, window_params = [{transform_indices = @transform_0, window_bounds = array<i64: 16, 32>}, {transform_indices = @transform_1, window_bounds = array<i64: 16, 1>}, {transform_indices = @transform_2, window_bounds = array<i64: 8, 1>}]} {
    %c1_i32 = arith.constant 1 : i32
    %0 = arith.muli %arg0, %c1_i32 : i32
    %1 = arith.addi %0, %arg1 : i32
    %c0_i32 = arith.constant 0 : i32
    %2 = arith.cmpi eq, %arg1, %c0_i32 : i32
    %3 = arith.extui %2 : i1 to i32
    %c0_i32_0 = arith.constant 0 : i32
    %4 = arith.cmpi ne, %3, %c0_i32_0 : i32
    scf.if %4 {
      %cst = arith.constant 0.000000e+00 : f32
      %8 = vector.broadcast %cst : f32 to vector<8x1xf32>
      %c0 = arith.constant 0 : index
      %c0_3 = arith.constant 0 : index
      %9 = vector.load %arg4[%c0, %c0_3] : memref<8x1xf32, #tpu.memory_space<vmem>>, vector<8x1xf32>
      tpu.vector_store %arg4[%c0, %c0_3], %8 {strides = array<i32>} : memref<8x1xf32, #tpu.memory_space<vmem>>, vector<8x1xf32>,
      %10 = tpu.iota {dimensions = array<i32: 1>} : vector<16x32xi32>
      %c0_4 = arith.constant 0 : index
      %c0_5 = arith.constant 0 : index
      %11 = vector.load %arg5[%c0_4, %c0_5] : memref<16x32xi32, #tpu.memory_space<vmem>>, vector<16x32xi32>
      tpu.vector_store %arg5[%c0_4, %c0_5], %10 {strides = array<i32>} : memref<16x32xi32, #tpu.memory_space<vmem>>, vector<16x32xi32>,
    } else {
    }
    %c1_i32_1 = arith.constant 1 : i32
    %5 = arith.cmpi slt, %1, %c1_i32_1 : i32
    %6 = arith.extui %5 : i1 to i32
    %c0_i32_2 = arith.constant 0 : i32
    %7 = arith.cmpi ne, %6, %c0_i32_2 : i32
    scf.if %7 {
      %c0 = arith.constant 0 : index
      %c0_3 = arith.constant 0 : index
      %8 = vector.load %arg2[%c0, %c0_3] : memref<16x32xf32, #tpu.memory_space<vmem>>, vector<16x32xf32>
      %c0_4 = arith.constant 0 : index
      %c0_5 = arith.constant 0 : index
      %9 = vector.load %arg3[%c0_4, %c0_5] : memref<16x1xi32, #tpu.memory_space<vmem>>, vector<16x1xi32>
      %cst = arith.constant dense<0xFF800000> : vector<16xf32>
      %10 = vector.multi_reduction <maximumf>, %8, %cst [1] : vector<16x32xf32> to vector<16xf32>
      %11 = vector.shape_cast %10 : vector<16xf32> to vector<16x1xf32>
      %12 = vector.broadcast %11 : vector<16x1xf32> to vector<16x32xf32>
      %13 = arith.subf %8, %12 : vector<16x32xf32>
      %14 = math.exp %13 : vector<16x32xf32>
      %cst_6 = arith.constant dense<0.000000e+00> : vector<16xf32>
      %15 = vector.multi_reduction <add>, %14, %cst_6 [1] : vector<16x32xf32> to vector<16xf32>
      %16 = vector.shape_cast %15 : vector<16xf32> to vector<16x1xf32>
      %c0_7 = arith.constant 0 : index
      %c0_8 = arith.constant 0 : index
      %17 = vector.load %arg5[%c0_7, %c0_8] : memref<16x32xi32, #tpu.memory_space<vmem>>, vector<16x32xi32>
      %18 = vector.broadcast %9 : vector<16x1xi32> to vector<16x32xi32>
      %19 = arith.cmpi eq, %17, %18 : vector<16x32xi32>
      %cst_9 = arith.constant 0.000000e+00 : f32
      %20 = vector.broadcast %cst_9 : f32 to vector<16x32xf32>
      %21 = arith.select %19, %13, %20 : vector<16x32xi1>, vector<16x32xf32>
      %cst_10 = arith.constant dense<0.000000e+00> : vector<16xf32>
      %22 = vector.multi_reduction <add>, %21, %cst_10 [1] : vector<16x32xf32> to vector<16xf32>
      %23 = vector.shape_cast %22 : vector<16xf32> to vector<16x1xf32>
      %24 = math.log %16 : vector<16x1xf32>
      %25 = arith.subf %24, %23 : vector<16x1xf32>
      %cst_11 = arith.constant 0.000000e+00 : f32
      %26 = vector.broadcast %cst_11 : f32 to vector<16x1xf32>
      %27 = arith.maximumf %25, %26 : vector<16x1xf32>
      %cst_12 = arith.constant 0.000000e+00 : f32
      %28 = vector.broadcast %cst_12 : f32 to vector<16x1xf32>
      %29 = arith.subf %28, %27 : vector<16x1xf32>
      %30 = math.exp %29 : vector<16x1xf32>
      %cst_13 = arith.constant 1.000000e+00 : f32
      %31 = vector.broadcast %cst_13 : f32 to vector<16x1xf32>
      %32 = arith.subf %31, %30 : vector<16x1xf32>
      %33 = arith.mulf %32, %32 : vector<16x1xf32>
      %cst_14 = arith.constant 1.000000e+00 : f32
      %34 = vector.broadcast %cst_14 : f32 to vector<16x1xf32>
      %35 = arith.mulf %34, %33 : vector<16x1xf32>
      %36 = arith.mulf %35, %27 : vector<16x1xf32>
      %37 = tpu.iota {dimensions = array<i32: 0>} : vector<16x1xi32>
      %c16_i32 = arith.constant 16 : i32
      %38 = arith.muli %1, %c16_i32 : i32
      %c16_i32_15 = arith.constant 16 : i32
      %39 = arith.subi %c16_i32_15, %38 : i32
      %40 = vector.broadcast %39 : i32 to vector<16x1xi32>
      %41 = arith.cmpi slt, %37, %40 : vector<16x1xi32>
      %c0_16 = arith.constant 0 : index
      %c0_17 = arith.constant 0 : index
      %42 = vector.load %arg4[%c0_16, %c0_17] : memref<8x1xf32, #tpu.memory_space<vmem>>, vector<8x1xf32>
      %cst_18 = arith.constant 0.000000e+00 : f32
      %43 = vector.broadcast %cst_18 : f32 to vector<16x1xf32>
      %44 = arith.select %41, %36, %43 : vector<16x1xi1>, vector<16x1xf32>
      %45 = vector.shape_cast %44 : vector<16x1xf32> to vector<1x16x1xf32>
      %cst_19 = arith.constant dense<0.000000e+00> : vector<1xf32>
      %46 = vector.multi_reduction <add>, %45, %cst_19 [1, 2] : vector<1x16x1xf32> to vector<1xf32>
      %47 = vector.shape_cast %46 : vector<1xf32> to vector<1x1x1xf32>
      %48 = vector.extract %47[0, 0, 0] : f32 from vector<1x1x1xf32>
      %49 = vector.broadcast %48 : f32 to vector<8x1xf32>
      %50 = arith.addf %42, %49 : vector<8x1xf32>
      %c0_20 = arith.constant 0 : index
      %c0_21 = arith.constant 0 : index
      %51 = vector.load %arg4[%c0_20, %c0_21] : memref<8x1xf32, #tpu.memory_space<vmem>>, vector<8x1xf32>
      tpu.vector_store %arg4[%c0_20, %c0_21], %50 {strides = array<i32>} : memref<8x1xf32, #tpu.memory_space<vmem>>, vector<8x1xf32>,
    } else {
    }
    return
  }
  func.func @transform_0(%arg0: i32, %arg1: i32) -> (i32, i32) {
    %c1_i32 = arith.constant 1 : i32
    %0 = arith.muli %arg0, %c1_i32 : i32
    %1 = arith.addi %0, %arg1 : i32
    %c0_i32 = arith.constant 0 : i32
    %2 = arith.minsi %1, %c0_i32 : i32
    %c0_i32_0 = arith.constant 0 : i32
    %c0_i32_1 = arith.constant 0 : i32
    return %2, %c0_i32_0 : i32, i32
  }
  func.func @transform_1(%arg0: i32, %arg1: i32) -> (i32, i32) {
    %c1_i32 = arith.constant 1 : i32
    %0 = arith.muli %arg0, %c1_i32 : i32
    %1 = arith.addi %0, %arg1 : i32
    %c0_i32 = arith.constant 0 : i32
    %2 = arith.minsi %1, %c0_i32 : i32
    %c0_i32_0 = arith.constant 0 : i32
    %c0_i32_1 = arith.constant 0 : i32
    return %2, %c0_i32_0 : i32, i32
  }
  func.func @transform_2(%arg0: i32, %arg1: i32) -> (i32, i32) {
    %c0_i32 = arith.constant 0 : i32
    %c0_i32_0 = arith.constant 0 : i32
    return %arg0, %c0_i32 : i32, i32
  }
}

</mosaic_0001>

<llo_original>
// kernel: tpu_custom_call.1
$region0: #{tpu_custom_call.1}
  #allocation0 [shape = 'u32[]', space=smem, size = 0x4, offset = 0x4, fixed_abs, tag = 'smem constant byte address 0x4 - core index']
  #allocation1 [shape = 'u32[144,128]{1,0:T(1,128)}', space=vmem, size = 0x12000, scoped, tag = 'internal scratch']
  #allocation2 [shape = 's32[16,32]{1,0:T(8,128)}', space=vmem, size = 0x2000, scoped, tag = 'scratch operand']
  %s0 = inlined_call_operand.vmem [shape: f32[16,32], index: 0, kind: input, shape index: {}]
  %s1 = inlined_call_operand.vmem [shape: s32[16,1], index: 1, kind: input, shape index: {}]
  %s2 = inlined_call_operand.vmem [shape: f32[8,1], index: 2, kind: output, shape index: {}]
  %s3 = sld [smem:[#allocation0]]
  $region26: #{tpu_custom_call.1} parent=0
    _
  %s5 = ssub.s32 1, %s3
  %s6 = scalar_select 0, %s5, %s3
  // Predicated region
  $region2: #{tpu_custom_call.1} parent=0 // pred_check
    _
  $region3: #{tpu_custom_call.1} parent=0 // pred_check_branch
    %8 = sbr.rel (0) target = $region5
  $region4: #{tpu_custom_call.1} parent=0 // pred_region
    %s9 = sadd.s32 0, 0
    %p10 = scmp.lt.s32.totalorder %s9, 0
    %s11 = scalar_select %p10, %s9, 0
    %s12 = smul.u32 2, %s11
    %p13 = scmp.lt.s32.totalorder %s12, 1
    %s14 = scalar_select %p13, %s12, 1
    %s15 = smul.addr %s14, 8
    %s16 = scalar_lea.vmem %s0, %s15
    %s17 = sadd.s32 0, 0
    %p18 = scmp.lt.s32.totalorder %s17, 0
    %s19 = scalar_select %p18, %s17, 0
    %s20 = smul.u32 2, %s19
  $region5: #{tpu_custom_call.1} parent=0 // pred_fallthru
    _
  // Predicated region
  $region6: #{tpu_custom_call.1} parent=0 // pred_check
    _
  $region7: #{tpu_custom_call.1} parent=0 // pred_check_branch
    %22 = sbr.rel (0) target = $region9
  $region8: #{tpu_custom_call.1} parent=0 // pred_region
    %s23 = sadd.s32 0, 0
    %p24 = scmp.lt.s32.totalorder %s23, 0
    %s25 = scalar_select %p24, %s23, 0
    %s26 = smul.u32 2, %s25
    %p27 = scmp.lt.s32.totalorder %s26, 1
    %s28 = scalar_select %p27, %s26, 1
    %s29 = smul.addr %s28, 8
    %s30 = scalar_lea.vmem %s1, %s29
    %s31 = sadd.s32 0, 0
    %p32 = scmp.lt.s32.totalorder %s31, 0
    %s33 = scalar_select %p32, %s31, 0
    %s34 = smul.u32 2, %s33
  $region9: #{tpu_custom_call.1} parent=0 // pred_fallthru
    _
  %s35 = sadd.s32 0, 0
  %p36 = scmp.lt.s32.totalorder %s35, 0
  %s37 = scalar_select %p36, %s35, 0
  %s38 = smul.u32 2, %s37
  %p39 = scmp.lt.s32.totalorder %s38, 1
  %s40 = scalar_select %p39, %s38, 1
  %s41 = smul.addr %s40, 8
  %s42 = scalar_lea.vmem %s0, %s41
  %s43 = sadd.s32 0, 0
  %p44 = scmp.lt.s32.totalorder %s43, 0
  %s45 = scalar_select %p44, %s43, 0
  %s46 = smul.u32 2, %s45
  %p47 = scmp.lt.s32.totalorder %s46, 1
  %s48 = scalar_select %p47, %s46, 1
  %s49 = smul.addr %s48, 8
  %s50 = scalar_lea.vmem %s1, %s49
  %s51 = sadd.s32 0, 0
  %p52 = scmp.lt.s32.totalorder %s51, 0
  %s53 = scalar_select %p52, %s51, 0
  %s54 = smul.u32 2, %s53
  %p55 = scmp.lt.s32.totalorder %s54, 1
  %s56 = scalar_select %p55, %s54, 1
  %s57 = smul.addr %s56, 8
  %s58 = scalar_lea.vmem %s0, %s57
  %s59 = sadd.s32 0, 0
  %p60 = scmp.lt.s32.totalorder %s59, 0
  %s61 = scalar_select %p60, %s59, 0
  %s62 = smul.u32 2, %s61
  %s63 = sadd.s32 0, 0
  %p64 = scmp.lt.s32.totalorder %s63, 0
  %s65 = scalar_select %p64, %s63, 0
  %s66 = smul.u32 2, %s65
  %p67 = scmp.lt.s32.totalorder %s66, 1
  %s68 = scalar_select %p67, %s66, 1
  %s69 = smul.addr %s68, 8
  %s70 = scalar_lea.vmem %s1, %s69
  %s71 = sadd.s32 0, 0
  %p72 = scmp.lt.s32.totalorder %s71, 0
  %s73 = scalar_select %p72, %s71, 0
  %s74 = smul.u32 2, %s73
  %s75 = sadd.s32 0, 0
  %p76 = scmp.eq.s32.totalorder 0, 0
  // Predicated region
  $region10: #{tpu_custom_call.1} parent=0 // pred_check
    %p77 = pneg %p76
  $region11: #{tpu_custom_call.1} parent=0 // pred_check_branch
    %79 = sbr.rel (%p77) target = $region13
  $region12: #{tpu_custom_call.1} parent=0 // pred_region
    %vm80 = vcmask 7168
    %81 = vst.msk [vmem:[%s2] sm:$0xff] %vm80, 0.0
    %v82 = vlaneseq
    %v83 = vand.u32 %v82, 127
    %vm84 = vcmask 261120
    %85 = vst.msk [vmem:[#allocation2] sm:$0xff] %vm84, %v83
    %86 = vst.msk [vmem:[#allocation2 + $0x8] sm:$0xff] %vm84, %v83
  $region13: #{tpu_custom_call.1} parent=0 // pred_fallthru
    _
  %p87 = scmp.lt.s32.totalorder %s75, 1
  // Predicated region
  $region14: #{tpu_custom_call.1} parent=0 // pred_check
    %p88 = pneg %p87
  $region15: #{tpu_custom_call.1} parent=0 // pred_check_branch
    %90 = sbr.rel (%p88) target = $region17
  $region16: #{tpu_custom_call.1} parent=0 // pred_region
    %v91 = vld [vmem:[%s58] sm:$0xff]
    %v92 = vld [vmem:[%s58 + $0x8] sm:$0xff]
    %v93 = vld [vmem:[%s70] sm:$0xff]
    %v94 = vld [vmem:[%s70 + $0x8] sm:$0xff]
    %vm95 = vcmask 261120
    %v96 = vsel %vm95, %v91, -inf
    %97 = vmax.xlane.f32.xlu0 %v96
    %v98 = vpop.xlane.xlu0 %97
    %v99 = vsel %vm95, %v92, -inf
    %100 = vmax.xlane.f32.xlu0 %v99
    %v101 = vpop.xlane.xlu0 %100
    %v102 = vsub.f32 %v91, %v98
    %v103 = vsub.f32 %v92, %v101
    %v104 = vmul.f32 %v102, 1.442695
    %v105 = vpow.pop %v104
    %v106 = vmul.f32 %v103, 1.442695
    %v107 = vpow.pop %v106
    %v108 = vsel %vm95, %v105, 0.0
    %109 = vadd.xlane.f32.xlu0 %v108
    %v110 = vpop.xlane.xlu0 %109
    %v111 = vsel %vm95, %v107, 0.0
    %112 = vadd.xlane.f32.xlu0 %v111
    %v113 = vpop.xlane.xlu0 %112
    %v114 = vld [vmem:[#allocation2] sm:$0xff]
    %v115 = vld [vmem:[#allocation2 + $0x8] sm:$0xff]
    %116 = vset.pattern.permute.xlu0 0
    %117 = vperm.xlu0 %116, %v93
    %v118 = vpop.permute.xlu0 %117
    %119 = vset.pattern.permute.xlu0 0
    %120 = vperm.xlu0 %119, %v94
    %v121 = vpop.permute.xlu0 %120
    %vm122 = vcmp.eq.s32.totalorder %v114, %v118
    %vm123 = vcmp.eq.s32.totalorder %v115, %v121
    %v124 = vsel %vm122, %v102, 0.0
    %v125 = vsel %vm123, %v103, 0.0
    %v126 = vsel %vm95, %v124, 0.0
    %127 = vadd.xlane.f32.xlu0 %v126
    %v128 = vpop.xlane.xlu0 %127
    %v129 = vsel %vm95, %v125, 0.0
    %130 = vadd.xlane.f32.xlu0 %v129
    %v131 = vpop.xlane.xlu0 %130
    %v132 = vlog2.pop %v110
    %v133 = vmul.f32 %v132, 0.6931472
    %v134 = vlog2.pop %v113
    %v135 = vmul.f32 %v134, 0.6931472
    %v136 = vsub.f32 %v133, %v128
    %v137 = vsub.f32 %v135, %v131
    %v138 = vmax.f32 %v136, 0.0
    %v139 = vmax.f32 %v137, 0.0
    %v140 = vsub.f32 0.0, %v138
    %v141 = vsub.f32 0.0, %v139
    %v142 = vmul.f32 %v140, 1.442695
    %v143 = vpow.pop %v142
    %v144 = vmul.f32 %v141, 1.442695
    %v145 = vpow.pop %v144
    %v146 = vsub.f32 1.0, %v143
    %v147 = vsub.f32 1.0, %v145
    %v148 = vmul.f32 %v146, %v146
    %v149 = vmul.f32 %v147, %v147
    %v150 = vmul.f32 %v148, %v138
    %v151 = vmul.f32 %v149, %v139
    %v152 = vlaneseq
    %v153 = vshrl.u32 %v152, 7
    %v154 = vadd.s32 %v153, 8
    %s155 = smul.u32 %s75, 16
    %s156 = ssub.s32 16, %s155
    %v157 = vstv %s156
    %vm158 = vcmp.lt.s32.totalorder %v153, %v157
    %vm159 = vcmp.lt.s32.totalorder %v154, %v157
    %v160 = vld [vmem:[%s2] sm:$0xff]
    %v161 = vsel %vm158, %v150, 0.0
    %v162 = vsel %vm159, %v151, 0.0
    %vm163 = vcmask 7168
    %v164 = vsel %vm163, %v161, 0.0
    %v165 = vsel %vm163, %v162, 0.0
    %v166 = vadd.f32 %v164, %v165
    %167 = vadd.xlane.f32.xlu0 %v166
    %v168 = vpop.xlane.xlu0 %167
    %v169 = vrot.slane %v168, 4
    %v170 = vadd.f32 %v168, %v169
    %v171 = vrot.slane %v170, 2
    %v172 = vadd.f32 %v170, %v171
    %v173 = vrot.slane %v172, 1
    %v174 = vadd.f32 %v172, %v173
    %s175 = vtos %v174
    %v176 = vstv %s175
    %v177 = vadd.f32 %v160, %v176
    %178 = vst.msk [vmem:[%s2] sm:$0xff] %vm163, %v177
  $region17: #{tpu_custom_call.1} parent=0 // pred_fallthru
    _
  // Predicated region
  $region18: #{tpu_custom_call.1} parent=0 // pred_check
    _
  $region19: #{tpu_custom_call.1} parent=0 // pred_check_branch
    %180 = sbr.rel (0) target = $region21
  $region20: #{tpu_custom_call.1} parent=0 // pred_region
    _
  $region21: #{tpu_custom_call.1} parent=0 // pred_fallthru
    _
  // Predicated region
  $region22: #{tpu_custom_call.1} parent=0 // pred_check
    _
  $region23: #{tpu_custom_call.1} parent=0 // pred_check_branch
    %182 = sbr.rel (0) target = $region25
  $region24: #{tpu_custom_call.1} parent=0 // pred_region
    _
  $region25: #{tpu_custom_call.1} parent=0 // pred_fallthru
    _

</llo_original>
